<compile_context>
chip_gen: v6e
topology: v6e:2x2x1
jax: 0.10.0
libtpu: 0.0.40
codegen_flags: <defaults>
</compile_context>

<pallas_src>
import jax
import jax.numpy as jnp
from jax.experimental import pallas as pl
from jax.experimental.pallas import tpu as pltpu

HIDDEN = 50      # out_features of exp_fc1 / var_fc1
ONES_ROW = 100   # h_T sublane carrying the constant 1 (layer-2 bias fold)
LANES = 128


def _gvn_kernel(x_ref, w1_ref, w2_ref, out_ref):
    # x_ref: (1, tb)  -- batch lives in lanes
    x_row = x_ref[...]                            # (1, tb)
    w1 = w1_ref[:, 0:1]                           # (128, 1): [W1_exp | W1_var | 0...]
    b1 = w1_ref[:, 1:2]                           # (128, 1): [b1_exp | b1_var | 1@row100 | 0...]
    # Layer 1, both heads, on the VPU: outer-product broadcast FMA + relu.
    h_t = jnp.maximum(w1 * x_row + b1, 0.0)       # (128, tb)
    # Layer 2, both heads, one MXU dot; h_t[ONES_ROW,:]==1 adds the layer-2 biases.
    y = jnp.dot(w2_ref[...], h_t, preferred_element_type=jnp.float32)   # (8, tb)
    # Only rows 0 (exp) and 1 (logvar) carry data -> store a (2, tb) lane-dense slab.
    out_ref[...] = y[0:2, :]


def pack_params(p):
    """Pack the 8 PyTorch-layout params into two tiny MXU/VPU-friendly f32 slabs."""
    # Layer-1 slab: col 0 = weight column, col 1 = bias column (+1 at ONES_ROW).
    w1p = jnp.zeros((LANES, 2), jnp.float32)
    w1p = w1p.at[0:HIDDEN, 0].set(p["exp_w1"][:, 0])            # (50,1) weight -> sublanes 0-49
    w1p = w1p.at[HIDDEN:2 * HIDDEN, 0].set(p["var_w1"][:, 0])   # sublanes 50-99
    w1p = w1p.at[0:HIDDEN, 1].set(p["exp_b1"])
    w1p = w1p.at[HIDDEN:2 * HIDDEN, 1].set(p["var_b1"])
    w1p = w1p.at[ONES_ROW, 1].set(1.0)                          # propagate 1 into h_T[100,:]

    # Layer-2 slab: row 0 -> exp head, row 1 -> logvar head, biases at col ONES_ROW.
    w2p = jnp.zeros((8, LANES), jnp.float32)
    w2p = w2p.at[0, 0:HIDDEN].set(p["exp_w2"][0, :])            # (1,50) weight
    w2p = w2p.at[1, HIDDEN:2 * HIDDEN].set(p["var_w2"][0, :])
    w2p = w2p.at[0, ONES_ROW].set(p["exp_b2"][0])
    w2p = w2p.at[1, ONES_ROW].set(p["var_b2"][0])
    return w1p, w2p


def _round_up(n, m):
    return ((n + m - 1) // m) * m


def gvn_forward(x, a, w1p, w2p, *, max_batch_tile=4096):
    """x: (B, 1) float; a: (B, num_actions) (unused by this module's forward).

    Returns (exp, logvar), each (B, 1) float32.
    """
    del a  # Impoverishedv4 forward ignores the action input
    B = x.shape[0]
    # Lane-aligned batch tile; aim for >=2 grid steps so both v7x TensorCores
    # get work (the extra step is harmless on 1-TC v5e/v6e).
    tb = min(max_batch_tile, max(LANES, _round_up(pl.cdiv(B, 2), LANES)))
    b_pad = _round_up(B, tb)

    # Batch-in-lanes input row: (B,1)->(1,B) is a free reshape; pad batch only.
    x_row = jnp.pad(x.astype(jnp.float32).reshape(1, B), ((0, 0), (0, b_pad - B)))

    cost = pl.CostEstimate(
        flops=int(b_pad * (2 * LANES + 2 * 8 * LANES)),
        transcendentals=0,
        bytes_accessed=int(4 * (b_pad * 1 + b_pad * 2 + w1p.size + w2p.size)),
    )

    out = pl.pallas_call(
        _gvn_kernel,
        out_shape=jax.ShapeDtypeStruct((2, b_pad), jnp.float32),
        grid=(b_pad // tb,),
        in_specs=[
            pl.BlockSpec((1, tb), lambda i: (0, i)),        # batch-tiled input row
            pl.BlockSpec((LANES, 2), lambda i: (0, 0)),     # resident layer-1 slab
            pl.BlockSpec((8, LANES), lambda i: (0, 0)),     # resident layer-2 slab
        ],
        out_specs=pl.BlockSpec((2, tb), lambda i: (0, i)),  # lane-dense 2-row output slab
        compiler_params=pltpu.CompilerParams(
            dimension_semantics=("parallel",)),             # megacore-shard batch axis
        cost_estimate=cost,
    )(x_row, w1p, w2p)

    res = out[:, :B]                    # single slice of the slab
    exp = res[0].reshape(B, 1)
    logvar = res[1].reshape(B, 1)
    return exp, logvar


def _xavier_uniform(key, out_f, in_f):
    # torch.nn.init.xavier_uniform on weight of shape (out, in)
    limit = jnp.sqrt(6.0 / (in_f + out_f))
    return jax.random.uniform(key, (out_f, in_f), jnp.float32, -limit, limit)


def init_params(key, *, bias_key=None):
    """PyTorch-faithful init: xavier_uniform weights, zero biases.

    If bias_key is given, biases are randomized instead (test-only, to
    exercise the bias-folding path in the kernel)."""
    ks = jax.random.split(key, 4)
    p = {
        "exp_w1": _xavier_uniform(ks[0], HIDDEN, 1),
        "exp_b1": jnp.zeros((HIDDEN,), jnp.float32),
        "exp_w2": _xavier_uniform(ks[1], 1, HIDDEN),
        "exp_b2": jnp.zeros((1,), jnp.float32),
        "var_w1": _xavier_uniform(ks[2], HIDDEN, 1),
        "var_b1": jnp.zeros((HIDDEN,), jnp.float32),
        "var_w2": _xavier_uniform(ks[3], 1, HIDDEN),
        "var_b2": jnp.zeros((1,), jnp.float32),
    }
    if bias_key is not None:
        bk = jax.random.split(bias_key, 4)
        p["exp_b1"] = 0.1 * jax.random.normal(bk[0], (HIDDEN,), jnp.float32)
        p["exp_b2"] = 0.1 * jax.random.normal(bk[1], (1,), jnp.float32)
        p["var_b1"] = 0.1 * jax.random.normal(bk[2], (HIDDEN,), jnp.float32)
        p["var_b2"] = 0.1 * jax.random.normal(bk[3], (1,), jnp.float32)
    return p


def forward_ref(x, a, p):
    """Pure-JAX reference (high-precision matmuls) matching the PyTorch forward."""
    del a
    hp = jax.lax.Precision.HIGHEST
    exp = jax.nn.relu(jnp.matmul(x, p["exp_w1"].T, precision=hp) + p["exp_b1"])
    exp = jnp.matmul(exp, p["exp_w2"].T, precision=hp) + p["exp_b2"]
    logvar = jax.nn.relu(jnp.matmul(x, p["var_w1"].T, precision=hp) + p["var_b1"])
    logvar = jnp.matmul(logvar, p["var_w2"].T, precision=hp) + p["var_b2"]
    return exp, logvar


if __name__ == "__main__":
    num_actions = 4
    key = jax.random.PRNGKey(0)
    k_param, k_bias, k_x, k_a = jax.random.split(key, 4)

    fwd = jax.jit(gvn_forward)   # fuses the pad / slices around the pallas_call

    # (batch, randomize-biases?) — second case exercises the multi-tile grid
    # path (600 rows -> 2 tiles of 384 lanes with padding) and the bias folding.
    for batch, use_rand_bias in ((16, False), (600, True)):
        params = init_params(k_param, bias_key=(k_bias if use_rand_bias else None))
        w1p, w2p = pack_params(params)

        x = jax.random.normal(jax.random.fold_in(k_x, batch), (batch, 1), jnp.float32)
        a_idx = jax.random.randint(jax.random.fold_in(k_a, batch), (batch,), 0, num_actions)
        a = jax.nn.one_hot(a_idx, num_actions, dtype=jnp.float32)  # encode_action equivalent

        exp, logvar = fwd(x, a, w1p, w2p)
        exp, logvar = jax.block_until_ready((exp, logvar))

        ref_exp, ref_logvar = forward_ref(x, a, params)
        assert exp.shape == (batch, 1) and logvar.shape == (batch, 1)
        assert jnp.allclose(exp, ref_exp, atol=2e-5, rtol=2e-5), "exp mismatch vs reference"
        assert jnp.allclose(logvar, ref_logvar, atol=2e-5, rtol=2e-5), "logvar mismatch vs reference"

    print("KERNEL_OK")
</pallas_src>

<mosaic_0001>
module attributes {stable_mosaic.version = 11 : i64} {
  func.func @_gvn_kernel(%arg0: i32, %arg1: memref<1x128xf32, #tpu.memory_space<vmem>>, %arg2: memref<128x2xf32, #tpu.memory_space<vmem>>, %arg3: memref<8x128xf32, #tpu.memory_space<vmem>>, %arg4: memref<2x128xf32, #tpu.memory_space<vmem>>) attributes {dimension_semantics = [#tpu.dimension_semantics<parallel>], iteration_bounds = array<i64: 1>, scalar_prefetch = 0 : i64, scratch_operands = 0 : i64, tpu.core_type = #tpu.core_type<tc>, window_params = [{transform_indices = @transform_0, window_bounds = array<i64: 1, 128>}, {pipeline_mode = #tpu.pipeline_mode<synchronous>, transform_indices = @transform_1, window_bounds = array<i64: 128, 2>}, {pipeline_mode = #tpu.pipeline_mode<synchronous>, transform_indices = @transform_2, window_bounds = array<i64: 8, 128>}, {transform_indices = @transform_3, window_bounds = array<i64: 2, 128>}]} {
    %c0 = arith.constant 0 : index
    %c0_0 = arith.constant 0 : index
    %0 = vector.load %arg1[%c0, %c0_0] : memref<1x128xf32, #tpu.memory_space<vmem>>, vector<1x128xf32>
    %c0_1 = arith.constant 0 : index
    %c0_2 = arith.constant 0 : index
    %1 = vector.load %arg2[%c0_1, %c0_2] : memref<128x2xf32, #tpu.memory_space<vmem>>, vector<128x1xf32>
    %c0_3 = arith.constant 0 : index
    %c1 = arith.constant 1 : index
    %2 = vector.load %arg2[%c0_3, %c1] : memref<128x2xf32, #tpu.memory_space<vmem>>, vector<128x1xf32>
    %3 = vector.broadcast %1 : vector<128x1xf32> to vector<128x128xf32>
    %4 = vector.broadcast %0 : vector<1x128xf32> to vector<128x128xf32>
    %5 = arith.mulf %3, %4 : vector<128x128xf32>
    %6 = vector.broadcast %2 : vector<128x1xf32> to vector<128x128xf32>
    %7 = arith.addf %5, %6 : vector<128x128xf32>
    %cst = arith.constant 0.000000e+00 : f32
    %8 = vector.broadcast %cst : f32 to vector<128x128xf32>
    %9 = arith.maximumf %7, %8 : vector<128x128xf32>
    %c0_4 = arith.constant 0 : index
    %c0_5 = arith.constant 0 : index
    %10 = vector.load %arg3[%c0_4, %c0_5] : memref<8x128xf32, #tpu.memory_space<vmem>>, vector<8x128xf32>
    %cst_6 = arith.constant dense<0.000000e+00> : vector<8x128xf32>
    %11 = tpu.matmul %10, %9, %cst_6 {dimension_numbers = #tpu.dot_dimension_numbers<[1], [0], [0], [1], [0, 0, 1, 1], [], []>} : vector<8x128xf32>, vector<128x128xf32>, vector<8x128xf32> -> vector<8x128xf32>
    %12 = vector.extract_strided_slice %11 {offsets = [0, 0], sizes = [2, 128], strides = [1, 1]} : vector<8x128xf32> to vector<2x128xf32>
    %c0_7 = arith.constant 0 : index
    %c0_8 = arith.constant 0 : index
    %13 = vector.load %arg4[%c0_7, %c0_8] : memref<2x128xf32, #tpu.memory_space<vmem>>, vector<2x128xf32>
    tpu.vector_store %arg4[%c0_7, %c0_8], %12 {strides = array<i32>} : memref<2x128xf32, #tpu.memory_space<vmem>>, vector<2x128xf32>,
    return
  }
  func.func @transform_0(%arg0: i32) -> (i32, i32) {
    %c0_i32 = arith.constant 0 : i32
    %c0_i32_0 = arith.constant 0 : i32
    return %c0_i32, %arg0 : i32, i32
  }
  func.func @transform_1(%arg0: i32) -> (i32, i32) {
    %c0_i32 = arith.constant 0 : i32
    %c0_i32_0 = arith.constant 0 : i32
    %c0_i32_1 = arith.constant 0 : i32
    return %c0_i32, %c0_i32_0 : i32, i32
  }
  func.func @transform_2(%arg0: i32) -> (i32, i32) {
    %c0_i32 = arith.constant 0 : i32
    %c0_i32_0 = arith.constant 0 : i32
    %c0_i32_1 = arith.constant 0 : i32
    return %c0_i32, %c0_i32_0 : i32, i32
  }
  func.func @transform_3(%arg0: i32) -> (i32, i32) {
    %c0_i32 = arith.constant 0 : i32
    %c0_i32_0 = arith.constant 0 : i32
    return %c0_i32, %arg0 : i32, i32
  }
}

</mosaic_0001>

<llo_original>
// kernel: gvn_forward.1
$region0: #{gvn_forward.1}
  #allocation0 [shape = 'u32[]', space=smem, size = 0x4, offset = 0x4, fixed_abs, tag = 'smem constant byte address 0x4 - core index']
  #allocation1 [shape = 'u32[144,128]{1,0:T(1,128)}', space=vmem, size = 0x12000, scoped, tag = 'internal scratch']
  %s0 = inlined_call_operand.vmem [shape: f32[1,128], index: 0, kind: input, shape index: {}]
  %s1 = inlined_call_operand.vmem [shape: f32[128,2], index: 1, kind: input, shape index: {}]
  %s2 = inlined_call_operand.vmem [shape: f32[8,128], index: 2, kind: input, shape index: {}]
  %s3 = inlined_call_operand.vmem [shape: f32[2,128], index: 3, kind: output, shape index: {}]
  %s4 = sld [smem:[#allocation0]]
  $region22: #{gvn_forward.1} parent=0
    _
  %s6 = ssub.s32 1, %s4
  %s7 = scalar_select 0, %s6, %s4
  // Predicated region
  $region2: #{gvn_forward.1} parent=0 // pred_check
    _
  $region3: #{gvn_forward.1} parent=0 // pred_check_branch
    %9 = sbr.rel (0) target = $region5
  $region4: #{gvn_forward.1} parent=0 // pred_region
    _
  $region5: #{gvn_forward.1} parent=0 // pred_fallthru
    _
  // Predicated region
  $region6: #{gvn_forward.1} parent=0 // pred_check
    _
  $region7: #{gvn_forward.1} parent=0 // pred_check_branch
    %11 = sbr.rel (0) target = $region9
  $region8: #{gvn_forward.1} parent=0 // pred_region
    _
  $region9: #{gvn_forward.1} parent=0 // pred_fallthru
    _
  // Predicated region
  $region10: #{gvn_forward.1} parent=0 // pred_check
    _
  $region11: #{gvn_forward.1} parent=0 // pred_check_branch
    %13 = sbr.rel (0) target = $region13
  $region12: #{gvn_forward.1} parent=0 // pred_region
    _
  $region13: #{gvn_forward.1} parent=0 // pred_fallthru
    _
  %v14 = vld [vmem:[%s0] sm:$0x1]
  %v15 = vld [vmem:[%s1] sm:$0xff]
  %v16 = vld [vmem:[%s1 + $0x8] sm:$0xff]
  %v17 = vld [vmem:[%s1 + $0x10] sm:$0xff]
  %v18 = vld [vmem:[%s1 + $0x18] sm:$0xff]
  %v19 = vld [vmem:[%s1 + $0x20] sm:$0xff]
  %v20 = vld [vmem:[%s1 + $0x28] sm:$0xff]
  %v21 = vld [vmem:[%s1 + $0x30] sm:$0xff]
  %v22 = vld [vmem:[%s1 + $0x38] sm:$0xff]
  %v23 = vld [vmem:[%s1 + $0x40] sm:$0xff]
  %v24 = vld [vmem:[%s1 + $0x48] sm:$0xff]
  %v25 = vld [vmem:[%s1 + $0x50] sm:$0xff]
  %v26 = vld [vmem:[%s1 + $0x58] sm:$0xff]
  %v27 = vld [vmem:[%s1 + $0x60] sm:$0xff]
  %v28 = vld [vmem:[%s1 + $0x68] sm:$0xff]
  %v29 = vld [vmem:[%s1 + $0x70] sm:$0xff]
  %v30 = vld [vmem:[%s1 + $0x78] sm:$0xff]
  %32 = vset.pattern.permute.xlu0 0
  %33 = vperm.xlu0 %32, %v15
  %v34 = vpop.permute.xlu0 %33
  %37 = vset.pattern.permute.xlu0 0
  %38 = vperm.xlu0 %37, %v16
  %v39 = vpop.permute.xlu0 %38
  %42 = vset.pattern.permute.xlu0 0
  %43 = vperm.xlu0 %42, %v17
  %v44 = vpop.permute.xlu0 %43
  %47 = vset.pattern.permute.xlu0 0
  %48 = vperm.xlu0 %47, %v18
  %v49 = vpop.permute.xlu0 %48
  %52 = vset.pattern.permute.xlu0 0
  %53 = vperm.xlu0 %52, %v19
  %v54 = vpop.permute.xlu0 %53
  %57 = vset.pattern.permute.xlu0 0
  %58 = vperm.xlu0 %57, %v20
  %v59 = vpop.permute.xlu0 %58
  %62 = vset.pattern.permute.xlu0 0
  %63 = vperm.xlu0 %62, %v21
  %v64 = vpop.permute.xlu0 %63
  %67 = vset.pattern.permute.xlu0 0
  %68 = vperm.xlu0 %67, %v22
  %v69 = vpop.permute.xlu0 %68
  %72 = vset.pattern.permute.xlu0 0
  %73 = vperm.xlu0 %72, %v23
  %v74 = vpop.permute.xlu0 %73
  %77 = vset.pattern.permute.xlu0 0
  %78 = vperm.xlu0 %77, %v24
  %v79 = vpop.permute.xlu0 %78
  %82 = vset.pattern.permute.xlu0 0
  %83 = vperm.xlu0 %82, %v25
  %v84 = vpop.permute.xlu0 %83
  %87 = vset.pattern.permute.xlu0 0
  %88 = vperm.xlu0 %87, %v26
  %v89 = vpop.permute.xlu0 %88
  %92 = vset.pattern.permute.xlu0 0
  %93 = vperm.xlu0 %92, %v27
  %v94 = vpop.permute.xlu0 %93
  %97 = vset.pattern.permute.xlu0 0
  %98 = vperm.xlu0 %97, %v28
  %v99 = vpop.permute.xlu0 %98
  %102 = vset.pattern.permute.xlu0 0
  %103 = vperm.xlu0 %102, %v29
  %v104 = vpop.permute.xlu0 %103
  %107 = vset.pattern.permute.xlu0 0
  %108 = vperm.xlu0 %107, %v30
  %v109 = vpop.permute.xlu0 %108
  %v112 = vlaneseq
  %v113 = vshrl.u32 %v112, 7
  %v114 = vsub.s32 0, %v113
  %v115 = vrot.slane %v14, %v114
  %v117 = vmul.f32 %v34, %v115
  %v118 = vmul.f32 %v39, %v115
  %v119 = vmul.f32 %v44, %v115
  %v120 = vmul.f32 %v49, %v115
  %v121 = vmul.f32 %v54, %v115
  %v122 = vmul.f32 %v59, %v115
  %v123 = vmul.f32 %v64, %v115
  %v124 = vmul.f32 %v69, %v115
  %v125 = vmul.f32 %v74, %v115
  %v126 = vmul.f32 %v79, %v115
  %v127 = vmul.f32 %v84, %v115
  %v128 = vmul.f32 %v89, %v115
  %v129 = vmul.f32 %v94, %v115
  %v130 = vmul.f32 %v99, %v115
  %v131 = vmul.f32 %v104, %v115
  %v132 = vmul.f32 %v109, %v115
  %133 = vset.pattern.permute.xlu0 1
  %134 = vperm.xlu0 %133, %v15
  %v135 = vpop.permute.xlu0 %134
  %137 = vset.pattern.permute.xlu0 1
  %138 = vperm.xlu0 %137, %v16
  %v139 = vpop.permute.xlu0 %138
  %141 = vset.pattern.permute.xlu0 1
  %142 = vperm.xlu0 %141, %v17
  %v143 = vpop.permute.xlu0 %142
  %145 = vset.pattern.permute.xlu0 1
  %146 = vperm.xlu0 %145, %v18
  %v147 = vpop.permute.xlu0 %146
  %149 = vset.pattern.permute.xlu0 1
  %150 = vperm.xlu0 %149, %v19
  %v151 = vpop.permute.xlu0 %150
  %153 = vset.pattern.permute.xlu0 1
  %154 = vperm.xlu0 %153, %v20
  %v155 = vpop.permute.xlu0 %154
  %157 = vset.pattern.permute.xlu0 1
  %158 = vperm.xlu0 %157, %v21
  %v159 = vpop.permute.xlu0 %158
  %161 = vset.pattern.permute.xlu0 1
  %162 = vperm.xlu0 %161, %v22
  %v163 = vpop.permute.xlu0 %162
  %165 = vset.pattern.permute.xlu0 1
  %166 = vperm.xlu0 %165, %v23
  %v167 = vpop.permute.xlu0 %166
  %169 = vset.pattern.permute.xlu0 1
  %170 = vperm.xlu0 %169, %v24
  %v171 = vpop.permute.xlu0 %170
  %173 = vset.pattern.permute.xlu0 1
  %174 = vperm.xlu0 %173, %v25
  %v175 = vpop.permute.xlu0 %174
  %177 = vset.pattern.permute.xlu0 1
  %178 = vperm.xlu0 %177, %v26
  %v179 = vpop.permute.xlu0 %178
  %181 = vset.pattern.permute.xlu0 1
  %182 = vperm.xlu0 %181, %v27
  %v183 = vpop.permute.xlu0 %182
  %185 = vset.pattern.permute.xlu0 1
  %186 = vperm.xlu0 %185, %v28
  %v187 = vpop.permute.xlu0 %186
  %189 = vset.pattern.permute.xlu0 1
  %190 = vperm.xlu0 %189, %v29
  %v191 = vpop.permute.xlu0 %190
  %193 = vset.pattern.permute.xlu0 1
  %194 = vperm.xlu0 %193, %v30
  %v195 = vpop.permute.xlu0 %194
  %v197 = vadd.f32 %v117, %v135
  %v198 = vadd.f32 %v118, %v139
  %v199 = vadd.f32 %v119, %v143
  %v200 = vadd.f32 %v120, %v147
  %v201 = vadd.f32 %v121, %v151
  %v202 = vadd.f32 %v122, %v155
  %v203 = vadd.f32 %v123, %v159
  %v204 = vadd.f32 %v124, %v163
  %v205 = vadd.f32 %v125, %v167
  %v206 = vadd.f32 %v126, %v171
  %v207 = vadd.f32 %v127, %v175
  %v208 = vadd.f32 %v128, %v179
  %v209 = vadd.f32 %v129, %v183
  %v210 = vadd.f32 %v130, %v187
  %v211 = vadd.f32 %v131, %v191
  %v212 = vadd.f32 %v132, %v195
  %v213 = vmax.f32 %v197, 0.0
  %v214 = vmax.f32 %v198, 0.0
  %v215 = vmax.f32 %v199, 0.0
  %v216 = vmax.f32 %v200, 0.0
  %v217 = vmax.f32 %v201, 0.0
  %v218 = vmax.f32 %v202, 0.0
  %v219 = vmax.f32 %v203, 0.0
  %v220 = vmax.f32 %v204, 0.0
  %v221 = vmax.f32 %v205, 0.0
  %v222 = vmax.f32 %v206, 0.0
  %v223 = vmax.f32 %v207, 0.0
  %v224 = vmax.f32 %v208, 0.0
  %v225 = vmax.f32 %v209, 0.0
  %v226 = vmax.f32 %v210, 0.0
  %v227 = vmax.f32 %v211, 0.0
  %v228 = vmax.f32 %v212, 0.0
  %v229 = vld [vmem:[%s2] sm:$0xff]
  %230 = vmatprep.subr.mxu0 0.0
  %231 = vmatpush1.msra.mxu0 %v228
  %232 = vmatprep.subr.mxu0 0.0
  %233 = vmatpush1.msra.mxu0 %v227
  %234 = vmatprep.subr.mxu0 0.0
  %235 = vmatpush1.msra.mxu0 %v226
  %236 = vmatprep.subr.mxu0 0.0
  %237 = vmatpush1.msra.mxu0 %v225
  %238 = vmatprep.subr.mxu0 0.0
  %239 = vmatpush1.msra.mxu0 %v224
  %240 = vmatprep.subr.mxu0 0.0
  %241 = vmatpush1.msra.mxu0 %v223
  %242 = vmatprep.subr.mxu0 0.0
  %243 = vmatpush1.msra.mxu0 %v222
  %244 = vmatprep.subr.mxu0 0.0
  %245 = vmatpush1.msra.mxu0 %v221
  %246 = vmatprep.subr.mxu0 0.0
  %247 = vmatpush1.msra.mxu0 %v220
  %248 = vmatprep.subr.mxu0 0.0
  %249 = vmatpush1.msra.mxu0 %v219
  %250 = vmatprep.subr.mxu0 0.0
  %251 = vmatpush1.msra.mxu0 %v218
  %252 = vmatprep.subr.mxu0 0.0
  %253 = vmatpush1.msra.mxu0 %v217
  %254 = vmatprep.subr.mxu0 0.0
  %255 = vmatpush1.msra.mxu0 %v216
  %256 = vmatprep.subr.mxu0 0.0
  %257 = vmatpush1.msra.mxu0 %v215
  %258 = vmatprep.subr.mxu0 0.0
  %259 = vmatpush1.msra.mxu0 %v214
  %260 = vmatprep.subr.mxu0 0.0
  %261 = vmatpush1.msra.mxu0 %v213
  %262 = vmatprep.subr.mxu0 0.0
  %263 = vmatpush2.msra.mxu0 0.0
  %264 = vmatprep.subr.mxu0 0.0
  %265 = vmatpush2.msra.mxu0 0.0
  %266 = vmatprep.subr.mxu0 0.0
  %267 = vmatpush2.msra.mxu0 0.0
  %268 = vmatprep.subr.mxu0 0.0
  %269 = vmatpush2.msra.mxu0 0.0
  %270 = vmatprep.subr.mxu0 0.0
  %271 = vmatpush2.msra.mxu0 0.0
  %272 = vmatprep.subr.mxu0 0.0
  %273 = vmatpush2.msra.mxu0 0.0
  %274 = vmatprep.subr.mxu0 0.0
  %275 = vmatpush2.msra.mxu0 0.0
  %276 = vmatprep.subr.mxu0 0.0
  %277 = vmatpush2.msra.mxu0 0.0
  %278 = vmatprep.subr.mxu0 0.0
  %279 = vmatpush2.msra.mxu0 0.0
  %280 = vmatprep.subr.mxu0 0.0
  %281 = vmatpush2.msra.mxu0 0.0
  %282 = vmatprep.subr.mxu0 0.0
  %283 = vmatpush2.msra.mxu0 0.0
  %284 = vmatprep.subr.mxu0 0.0
  %285 = vmatpush2.msra.mxu0 0.0
  %286 = vmatprep.subr.mxu0 0.0
  %287 = vmatpush2.msra.mxu0 0.0
  %288 = vmatprep.subr.mxu0 0.0
  %289 = vmatpush2.msra.mxu0 0.0
  %290 = vmatprep.subr.mxu0 0.0
  %291 = vmatpush2.msra.mxu0 0.0
  %292 = vmatprep.subr.mxu0 0.0
  %293 = vmatpush2.msra.mxu0 0.0
  %294 = vmatprep.mubr.f32.mxu0 0.0
  %295 = vmatmul.mubr.f32.gmra.mxu0 %v229
  %v296 = vpop.f32.mrf.mxu0
  %v297 = vadd.f32 0.0, %v296
  %v298 = vpop.f32.mrf.mxu0
  %299 = vdwg.mxu0
  %300 = vst [vmem:[%s3] sm:$0x3] %v297
  // Predicated region
  $region14: #{gvn_forward.1} parent=0 // pred_check
    _
  $region15: #{gvn_forward.1} parent=0 // pred_check_branch
    %302 = sbr.rel (0) target = $region17
  $region16: #{gvn_forward.1} parent=0 // pred_region
    _
  $region17: #{gvn_forward.1} parent=0 // pred_fallthru
    _
  // Predicated region
  $region18: #{gvn_forward.1} parent=0 // pred_check
    _
  $region19: #{gvn_forward.1} parent=0 // pred_check_branch
    %304 = sbr.rel (0) target = $region21
  $region20: #{gvn_forward.1} parent=0 // pred_region
    _
  $region21: #{gvn_forward.1} parent=0 // pred_fallthru
    _

</llo_original>
